<compile_context>
chip_gen: v5e
topology: v5e:2x2
jax: 0.10.0
libtpu: 0.0.40
codegen_flags: <defaults>
</compile_context>

<pallas_src>
import functools

import jax
import jax.numpy as jnp
from jax.experimental import pallas as pl
from jax.experimental.pallas import tpu as pltpu


def _shortcut_kernel(pad, c_in, h_out, w_out, x_ref, s_ref, o_ref):
    """One batch image per grid step.

    x_ref: (c_in * h, w)          -- full input image, channel/row axes fused
    s_ref: (w, w_out)             -- 0/1 even-column selector (exact)
    o_ref: (c_out * h_out, w_out) -- zero-padded, decimated output image
    """
    # Even-row decimation of every channel in one sublane-strided load
    # (valid because H is even, so within the fused (C*H) axis row parity
    # equals the per-channel row parity).
    rows = x_ref[pl.ds(0, c_in * h_out, stride=2), :]            # (c_in*h_out, w)

    # Even-column decimation via exact 0/1 selection: one batched matmul
    # covering all channels/rows of the image.
    sub = jnp.dot(rows, s_ref[...], preferred_element_type=jnp.float32)

    if pad > 0:
        zeros = jnp.zeros((pad * h_out, w_out), dtype=o_ref.dtype)
        o_ref[: pad * h_out, :] = zeros                          # leading pad channels
        o_ref[(pad + c_in) * h_out:, :] = zeros                  # trailing pad channels
    o_ref[pad * h_out:(pad + c_in) * h_out, :] = sub.astype(o_ref.dtype)


def lambda_shortcut_a(x, planes):
    """Pallas TPU implementation of:
        F.pad(x[:, :, ::2, ::2], (0, 0, 0, 0, planes//4, planes//4), "constant", 0)
    """
    n, c_in, h, w = x.shape
    assert h % 2 == 0 and w % 2 == 0, "shortcut-A kernel expects even H/W"
    pad = planes // 4
    c_out = c_in + 2 * pad
    h_out, w_out = h // 2, w // 2
    itemsize = jnp.dtype(x.dtype).itemsize

    # Free row-major collapse of (C, H) -> C*H so one strided load decimates
    # the rows of every channel at once.
    x2 = x.reshape(n, c_in * h, w)

    # 0/1 selector that picks even columns (exact in any float dtype).
    s_sel = (jnp.arange(w)[:, None] == 2 * jnp.arange(w_out)[None, :]).astype(x.dtype)

    kernel = functools.partial(_shortcut_kernel, pad, c_in, h_out, w_out)

    cost = pl.CostEstimate(
        flops=2 * n * (c_in * h_out) * w * w_out,
        transcendentals=0,
        bytes_accessed=(n * c_in * h * w + w * w_out + n * c_out * h_out * w_out)
        * itemsize,
    )

    out2 = pl.pallas_call(
        kernel,
        out_shape=jax.ShapeDtypeStruct((n, c_out * h_out, w_out), x.dtype),
        grid_spec=pltpu.PrefetchScalarGridSpec(
            num_scalar_prefetch=0,
            grid=(n,),
            in_specs=[
                # whole (C*H, W) image per step; pad channels are never read
                pl.BlockSpec((pl.Squeezed(), c_in * h, w), lambda ni: (ni, 0, 0)),
                # small selector, resident across steps (constant block index)
                pl.BlockSpec((w, w_out), lambda ni: (0, 0)),
            ],
            out_specs=pl.BlockSpec(
                (pl.Squeezed(), c_out * h_out, w_out), lambda ni: (ni, 0, 0)
            ),
        ),
        compiler_params=pltpu.CompilerParams(dimension_semantics=("parallel",)),
        cost_estimate=cost,
    )(x2, s_sel)

    return out2.reshape(n, c_out, h_out, w_out)


class LambdaLayer:
    """JAX/Pallas equivalent of the PyTorch LambdaLayer: wraps a callable."""

    def __init__(self, lambd):
        self.lambd = lambd

    def __call__(self, x):
        return self.lambd(x)


if __name__ == "__main__":
    key = jax.random.PRNGKey(0)
    N, C, H, W = 2, 4, 16, 16
    planes = 8  # typical option-A shortcut: planes = 2 * in_planes

    x = jax.random.normal(key, (N, C, H, W), dtype=jnp.float32)

    layer = LambdaLayer(lambda t: lambda_shortcut_a(t, planes))
    out = jax.block_until_ready(layer(x))

    # pure-JAX reference of the lambda for a sanity check
    pad = planes // 4
    ref = jnp.pad(x[:, :, ::2, ::2], ((0, 0), (pad, pad), (0, 0), (0, 0)))
    assert out.shape == ref.shape, (out.shape, ref.shape)
    assert out.dtype == ref.dtype
    assert jnp.allclose(out, ref, atol=1e-5), "kernel output mismatch"

    print("KERNEL_OK")
</pallas_src>

<mosaic_0001>
module attributes {stable_mosaic.version = 11 : i64} {
  func.func @_shortcut_kernel(%arg0: i32, %arg1: memref<1x64x16xf32, #tpu.memory_space<vmem>>, %arg2: memref<16x8xf32, #tpu.memory_space<vmem>>, %arg3: memref<1x64x8xf32, #tpu.memory_space<vmem>>) attributes {dimension_semantics = [#tpu.dimension_semantics<parallel>], iteration_bounds = array<i64: 2>, scalar_prefetch = 0 : i64, scratch_operands = 0 : i64, tpu.core_type = #tpu.core_type<tc>, window_params = [{transform_indices = @transform_0, window_bounds = array<i64: 1, 64, 16>}, {pipeline_mode = #tpu.pipeline_mode<synchronous>, transform_indices = @transform_1, window_bounds = array<i64: 16, 8>}, {transform_indices = @transform_2, window_bounds = array<i64: 1, 64, 8>}]} {
    %c0 = arith.constant 0 : index
    %c0_0 = arith.constant 0 : index
    %c0_1 = arith.constant 0 : index
    %0 = tpu.strided_load %arg1[%c0, %c0_0, %c0_1] {strides = array<i32: 1, 2, 1>} : memref<1x64x16xf32, #tpu.memory_space<vmem>>, vector<1x32x16xf32>
    %1 = vector.shape_cast %0 : vector<1x32x16xf32> to vector<32x16xf32>
    %c0_2 = arith.constant 0 : index
    %c0_3 = arith.constant 0 : index
    %2 = vector.load %arg2[%c0_2, %c0_3] : memref<16x8xf32, #tpu.memory_space<vmem>>, vector<16x8xf32>
    %cst = arith.constant dense<0.000000e+00> : vector<32x8xf32>
    %3 = tpu.matmul %1, %2, %cst {dimension_numbers = #tpu.dot_dimension_numbers<[1], [0], [0], [1], [0, 0, 1, 1], [], []>} : vector<32x16xf32>, vector<16x8xf32>, vector<32x8xf32> -> vector<32x8xf32>
    %cst_4 = arith.constant 0.000000e+00 : f32
    %4 = vector.broadcast %cst_4 : f32 to vector<16x8xf32>
    %c0_5 = arith.constant 0 : index
    %c0_6 = arith.constant 0 : index
    %c0_7 = arith.constant 0 : index
    %5 = vector.load %arg3[%c0_5, %c0_6, %c0_7] : memref<1x64x8xf32, #tpu.memory_space<vmem>>, vector<1x16x8xf32>
    %6 = vector.shape_cast %5 : vector<1x16x8xf32> to vector<16x8xf32>
    %7 = vector.shape_cast %4 : vector<16x8xf32> to vector<1x16x8xf32>
    tpu.vector_store %arg3[%c0_5, %c0_6, %c0_7], %7 {strides = array<i32>} : memref<1x64x8xf32, #tpu.memory_space<vmem>>, vector<1x16x8xf32>,
    %c0_8 = arith.constant 0 : index
    %c48 = arith.constant 48 : index
    %c0_9 = arith.constant 0 : index
    %8 = vector.load %arg3[%c0_8, %c48, %c0_9] : memref<1x64x8xf32, #tpu.memory_space<vmem>>, vector<1x16x8xf32>
    %9 = vector.shape_cast %8 : vector<1x16x8xf32> to vector<16x8xf32>
    %10 = vector.shape_cast %4 : vector<16x8xf32> to vector<1x16x8xf32>
    tpu.vector_store %arg3[%c0_8, %c48, %c0_9], %10 {strides = array<i32>} : memref<1x64x8xf32, #tpu.memory_space<vmem>>, vector<1x16x8xf32>,
    %c0_10 = arith.constant 0 : index
    %c16 = arith.constant 16 : index
    %c0_11 = arith.constant 0 : index
    %11 = vector.load %arg3[%c0_10, %c16, %c0_11] : memref<1x64x8xf32, #tpu.memory_space<vmem>>, vector<1x32x8xf32>
    %12 = vector.shape_cast %11 : vector<1x32x8xf32> to vector<32x8xf32>
    %13 = vector.shape_cast %3 : vector<32x8xf32> to vector<1x32x8xf32>
    tpu.vector_store %arg3[%c0_10, %c16, %c0_11], %13 {strides = array<i32>} : memref<1x64x8xf32, #tpu.memory_space<vmem>>, vector<1x32x8xf32>,
    return
  }
  func.func @transform_0(%arg0: i32) -> (i32, i32, i32) {
    %c0_i32 = arith.constant 0 : i32
    %c0_i32_0 = arith.constant 0 : i32
    %c0_i32_1 = arith.constant 0 : i32
    return %arg0, %c0_i32, %c0_i32_0 : i32, i32, i32
  }
  func.func @transform_1(%arg0: i32) -> (i32, i32) {
    %c0_i32 = arith.constant 0 : i32
    %c0_i32_0 = arith.constant 0 : i32
    %c0_i32_1 = arith.constant 0 : i32
    return %c0_i32, %c0_i32_0 : i32, i32
  }
  func.func @transform_2(%arg0: i32) -> (i32, i32, i32) {
    %c0_i32 = arith.constant 0 : i32
    %c0_i32_0 = arith.constant 0 : i32
    %c0_i32_1 = arith.constant 0 : i32
    return %arg0, %c0_i32, %c0_i32_0 : i32, i32, i32
  }
}

</mosaic_0001>

<llo_original>
// kernel: tpu_custom_call.1
$region0: #{tpu_custom_call.1}
  #allocation0 [shape = 'u32[]', space=smem, size = 0x4, offset = 0x4, fixed_abs, tag = 'smem constant byte address 0x4 - core index']
  #allocation1 [shape = 'u32[72,128]{1,0:T(1,128)}', space=vmem, size = 0x9000, scoped, tag = 'internal scratch']
  %s0 = inlined_call_operand.vmem [shape: f32[2,64,16], index: 0, kind: input, shape index: {}]
  %s1 = inlined_call_operand.vmem [shape: f32[16,8], index: 1, kind: input, shape index: {}]
  %s2 = inlined_call_operand.vmem [shape: f32[2,64,8], index: 2, kind: output, shape index: {}]
  %s3 = sld [smem:[#allocation0]]
  $region41: #{tpu_custom_call.1} parent=0
    _
  %s5 = ssub.s32 1, %s3
  %s6 = scalar_select 0, %s5, %s3
  loop: start=0, step=1, limit=4
  $region2: #{tpu_custom_call.1} parent=0 // loop_pre_header
    _
  $region3: #{tpu_custom_call.1} parent=0 // loop_header
    %s8 = sphi 0, %s12
    %p9 = scmp.ge.s32.totalorder %s8, 4
    %s18 = sphi 0, %s20
    %s21 = sphi 0, %s18
    %s22 = sphi 0, %s21
    %s38 = sphi 0, %s22
    %s42 = sphi 0, %s42
    %s44 = sphi 0, %s42
    %s45 = sphi 0, %s44
    %s59 = sphi 0, %s45
    %s65 = sphi 0, %s67
    %s68 = sphi 0, %s65
    %s69 = sphi 0, %s68
    %s85 = sphi 0, %s69
  $region4: #{tpu_custom_call.1} parent=0 // loop_header_branch
    %11 = sbr.rel (%p9) target = $region8
  $region5: #{tpu_custom_call.1} parent=0 // loop_body
    %s13 = ssub.s32 %s8, 1
    %s14 = ssub.s32 %s8, 2
    %s15 = sadd.s32 %s8, 1
    %s16 = ssub.s32 %s8, %s15
    %p17 = scmp.eq.s32.totalorder %s16, 0
    %s19 = sadd.s32 %s18, 1
    %s20 = scalar_select %p17, %s18, %s19
    %p23 = pneg %p17
    %p24 = scmp.eq.s32.totalorder %s8, 1
    %p25 = por %p23, %p24
    %p26 = scmp.ne.s32.totalorder %s18, %s21
    %p27 = scmp.eq.s32.totalorder %s8, 0
    %p28 = por %p26, %p27
    %p29 = scmp.ne.s32.totalorder %s18, %s21
    %p30 = scmp.eq.s32.totalorder %s13, 1
    %p31 = por %p29, %p30
    %p32 = scmp.ne.s32.totalorder %s21, %s22
    %p33 = scmp.eq.s32.totalorder %s13, 0
    %p34 = por %p32, %p33
    %p35 = scmp.ne.s32.totalorder %s21, %s22
    %p36 = scmp.eq.s32.totalorder %s14, 1
    %p37 = por %p35, %p36
    %p39 = scmp.ne.s32.totalorder %s22, %s38
    %p40 = scmp.eq.s32.totalorder %s14, 0
    %p41 = por %p39, %p40
    %s43 = sadd.s32 %s42, 1
    %p46 = scmp.eq.s32.totalorder %s8, 1
    %p47 = scmp.ne.s32.totalorder %s42, %s44
    %p48 = scmp.eq.s32.totalorder %s8, 0
    %p49 = por %p47, %p48
    %p50 = scmp.ne.s32.totalorder %s42, %s44
    %p51 = scmp.eq.s32.totalorder %s13, 1
    %p52 = por %p50, %p51
    %p53 = scmp.ne.s32.totalorder %s44, %s45
    %p54 = scmp.eq.s32.totalorder %s13, 0
    %p55 = por %p53, %p54
    %p56 = scmp.ne.s32.totalorder %s44, %s45
    %p57 = scmp.eq.s32.totalorder %s14, 1
    %p58 = por %p56, %p57
    %p60 = scmp.ne.s32.totalorder %s45, %s59
    %p61 = scmp.eq.s32.totalorder %s14, 0
    %p62 = por %p60, %p61
    %s63 = ssub.s32 %s8, %s15
    %p64 = scmp.eq.s32.totalorder %s63, 0
    %s66 = sadd.s32 %s65, 1
    %s67 = scalar_select %p64, %s65, %s66
    %p70 = pneg %p64
    %p71 = scmp.eq.s32.totalorder %s8, 1
    %p72 = por %p70, %p71
    %p73 = scmp.ne.s32.totalorder %s65, %s68
    %p74 = scmp.eq.s32.totalorder %s8, 0
    %p75 = por %p73, %p74
    %p76 = scmp.ne.s32.totalorder %s65, %s68
    %p77 = scmp.eq.s32.totalorder %s13, 1
    %p78 = por %p76, %p77
    %p79 = scmp.ne.s32.totalorder %s68, %s69
    %p80 = scmp.eq.s32.totalorder %s13, 0
    %p81 = por %p79, %p80
    %p82 = scmp.ne.s32.totalorder %s68, %s69
    %p83 = scmp.eq.s32.totalorder %s14, 1
    %p84 = por %p82, %p83
    %p86 = scmp.ne.s32.totalorder %s69, %s85
    %p87 = scmp.eq.s32.totalorder %s14, 0
    %p88 = por %p86, %p87
    %p89 = scmp.le.s32.totalorder 1, %s8
    %p90 = scmp.lt.s32.totalorder %s8, 3
    %p91 = pnand %p89, %p90
    %p92 = pneg %p91
    // Predicated region
    $region9: #{tpu_custom_call.1} parent=5 // pred_check
      _
    $region10: #{tpu_custom_call.1} parent=5 // pred_check_branch
      %94 = sbr.rel (%p91) target = $region12
    $region11: #{tpu_custom_call.1} parent=5 // pred_region
      %s95 = ssub.s32 %s8, 1
      // Predicated region
      $region13: #{tpu_custom_call.1} parent=11 // pred_check
        %p96 = pneg %p55
      $region14: #{tpu_custom_call.1} parent=11 // pred_check_branch
        %98 = sbr.rel (%p96) target = $region16
      $region15: #{tpu_custom_call.1} parent=11 // pred_region
        _
      $region16: #{tpu_custom_call.1} parent=11 // pred_fallthru
        _
    $region12: #{tpu_custom_call.1} parent=5 // pred_fallthru
      _
    %p99 = scmp.lt.s32.totalorder %s8, 2
    // Predicated region
    $region17: #{tpu_custom_call.1} parent=5 // pred_check
      %p100 = pneg %p99
    $region18: #{tpu_custom_call.1} parent=5 // pred_check_branch
      %102 = sbr.rel (%p100) target = $region20
    $region19: #{tpu_custom_call.1} parent=5 // pred_region
      // Predicated region
      $region21: #{tpu_custom_call.1} parent=19 // pred_check
        %p103 = pneg %p28
      $region22: #{tpu_custom_call.1} parent=19 // pred_check_branch
        %105 = sbr.rel (%p103) target = $region24
      $region23: #{tpu_custom_call.1} parent=19 // pred_region
        %p106 = scmp.lt.s32.totalorder %s8, 1
        %s107 = scalar_select %p106, %s8, 1
        %s108 = smul.addr %s107, 8
        %s109 = smul.addr %s108, 8
        %s110 = scalar_lea.vmem %s0, %s109
      $region24: #{tpu_custom_call.1} parent=19 // pred_fallthru
        _
    $region20: #{tpu_custom_call.1} parent=5 // pred_fallthru
      _
    %p111 = scmp.le.s32.totalorder 1, %s8
    %p112 = scmp.lt.s32.totalorder %s8, 3
    %p113 = pnand %p111, %p112
    %p114 = pneg %p113
    // Predicated region
    $region25: #{tpu_custom_call.1} parent=5 // pred_check
      _
    $region26: #{tpu_custom_call.1} parent=5 // pred_check_branch
      %116 = sbr.rel (%p113) target = $region28
    $region27: #{tpu_custom_call.1} parent=5 // pred_region
      %s117 = ssub.s32 %s8, 1
      %p118 = scmp.lt.s32.totalorder %s13, 1
      %s119 = scalar_select %p118, %s13, 1
      %s120 = smul.addr %s119, 8
      %s121 = smul.addr %s120, 8
      %s122 = scalar_lea.vmem %s0, %s121
      %p123 = pneg %p34
      %p124 = pneg %p31
      %p125 = pneg %p55
      %p126 = pneg %p52
      %p127 = pneg %p81
      %p128 = pneg %p78
      %p129 = scmp.lt.s32.totalorder %s13, 1
      %s130 = scalar_select %p129, %s13, 1
      %s131 = smul.addr %s130, 8
      %s132 = smul.addr %s131, 8
      %s133 = scalar_lea.vmem %s2, %s132
      %p134 = scmp.lt.s32.totalorder %s13, 1
      %s135 = scalar_select %p134, %s13, 1
      %s136 = smul.addr %s135, 8
      %s137 = smul.addr %s136, 8
      %s138 = scalar_lea.vmem %s0, %s137
      %p139 = scmp.lt.s32.totalorder %s13, 1
      %s140 = scalar_select %p139, %s13, 1
      %s141 = smul.addr %s140, 8
      %s142 = smul.addr %s141, 8
      %s143 = scalar_lea.vmem %s2, %s142
      %v144 = vld [vmem:[%s138] ss:$2 sm:$0xff]
      %s145 = scalar_lea.vmem %s138, 16
      %v146 = vld [vmem:[%s145] ss:$2 sm:$0xff]
      %s147 = scalar_lea.vmem %s138, 32
      %v148 = vld [vmem:[%s147] ss:$2 sm:$0xff]
      %s149 = scalar_lea.vmem %s138, 48
      %v150 = vld [vmem:[%s149] ss:$2 sm:$0xff]
      %v151 = vld [vmem:[%s1] sm:$0xff]
      %v152 = vld [vmem:[%s1 + $0x8] sm:$0xff]
      %vm153 = vcmask 130048
      %v155 = vsel %vm153, %v144, 0
      %v158 = vsel %vm153, %v146, 0
      %v161 = vsel %vm153, %v148, 0
      %v164 = vsel %vm153, %v150, 0
      %166 = vmatpush.msra.mxu0 0.0
      %167 = vmatpush.msra.mxu0 0.0
      %168 = vmatpush.msra.mxu0 0.0
      %169 = vmatpush.msra.mxu0 0.0
      %170 = vmatpush.msra.mxu0 0.0
      %171 = vmatpush.msra.mxu0 0.0
      %172 = vmatpush.msra.mxu0 0.0
      %173 = vmatpush.msra.mxu0 0.0
      %174 = vmatpush.msra.mxu0 0.0
      %175 = vmatpush.msra.mxu0 0.0
      %176 = vmatpush.msra.mxu0 0.0
      %177 = vmatpush.msra.mxu0 0.0
      %178 = vmatpush.msra.mxu0 0.0
      %179 = vmatpush.msra.mxu0 0.0
      %180 = vmatpush.msra.mxu0 %v152
      %181 = vmatpush.msra.mxu0 %v151
      %182 = vmatmul.f32.gmra.mxu0 %v155
      %v183 = vpop.f32.mrf.mxu0
      %v184 = vadd.f32 0.0, %v183
      %185 = vmatmul.f32.gmra.mxu0 %v158
      %v186 = vpop.f32.mrf.mxu0
      %v187 = vadd.f32 0.0, %v186
      %188 = vmatmul.f32.gmra.mxu0 %v161
      %v189 = vpop.f32.mrf.mxu0
      %v190 = vadd.f32 0.0, %v189
      %191 = vmatmul.f32.gmra.mxu0 %v164
      %v192 = vpop.f32.mrf.mxu0
      %v193 = vadd.f32 0.0, %v192
      %194 = vdwg.mxu0
      %vm195 = vcmask 64512
      %196 = vst.msk [vmem:[%s143] sm:$0xff] %vm195, 0.0
      %197 = vst.msk [vmem:[%s143 + $0x8] sm:$0xff] %vm195, 0.0
      %198 = vst.msk [vmem:[%s143 + $0x30] sm:$0xff] %vm195, 0.0
      %199 = vst.msk [vmem:[%s143 + $0x38] sm:$0xff] %vm195, 0.0
      %200 = vst.msk [vmem:[%s143 + $0x10] sm:$0xff] %vm195, %v184
      %201 = vst.msk [vmem:[%s143 + $0x18] sm:$0xff] %vm195, %v187
      %202 = vst.msk [vmem:[%s143 + $0x20] sm:$0xff] %vm195, %v190
      %203 = vst.msk [vmem:[%s143 + $0x28] sm:$0xff] %vm195, %v193
      %p204 = scmp.lt.s32.totalorder %s13, 1
      %s205 = scalar_select %p204, %s13, 1
      %s206 = smul.addr %s205, 8
      %s207 = smul.addr %s206, 8
      %s208 = scalar_lea.vmem %s2, %s207
      // Predicated region
      $region29: #{tpu_custom_call.1} parent=27 // pred_check
        %p209 = pneg %p78
      $region30: #{tpu_custom_call.1} parent=27 // pred_check_branch
        %211 = sbr.rel (%p209) target = $region32
      $region31: #{tpu_custom_call.1} parent=27 // pred_region
        _
      $region32: #{tpu_custom_call.1} parent=27 // pred_fallthru
        _
    $region28: #{tpu_custom_call.1} parent=5 // pred_fallthru
      _
    %p212 = scmp.le.s32.totalorder 2, %s8
    // Predicated region
    $region33: #{tpu_custom_call.1} parent=5 // pred_check
      %p213 = pneg %p212
    $region34: #{tpu_custom_call.1} parent=5 // pred_check_branch
      %215 = sbr.rel (%p213) target = $region36
    $region35: #{tpu_custom_call.1} parent=5 // pred_region
      %s216 = ssub.s32 %s8, 2
      // Predicated region
      $region37: #{tpu_custom_call.1} parent=35 // pred_check
        %p217 = pneg %p84
      $region38: #{tpu_custom_call.1} parent=35 // pred_check_branch
        %219 = sbr.rel (%p217) target = $region40
      $region39: #{tpu_custom_call.1} parent=35 // pred_region
        %p220 = scmp.lt.s32.totalorder %s14, 1
        %s221 = scalar_select %p220, %s14, 1
        %s222 = smul.addr %s221, 8
        %s223 = smul.addr %s222, 8
        %s224 = scalar_lea.vmem %s2, %s223
      $region40: #{tpu_custom_call.1} parent=35 // pred_fallthru
        _
    $region36: #{tpu_custom_call.1} parent=5 // pred_fallthru
      _
  $region6: #{tpu_custom_call.1} parent=0 // loop_footer
    %s12 = sadd.s32 1, %s8
  $region7: #{tpu_custom_call.1} parent=0 // loop_footer_branch
    %7 = sbr.rel target = $region3
  $region8: #{tpu_custom_call.1} parent=0 // loop_exit
    _

</llo_original>
